<compile_context>
chip_gen: v7x
topology: tpu7x:2x2x1
jax: 0.10.0
libtpu: 0.0.40
codegen_flags: <defaults>
</compile_context>

<pallas_src>
import jax
import jax.numpy as jnp
from jax.experimental import pallas as pl
from jax.experimental.pallas import tpu as pltpu

EPS = 1e-6

# Rows at/below this are handled as a single VMEM-resident block (the module's
# real input is 49 rows).  Above it we tile rows so the kernel also fits v7x's
# smaller VMEM and its two TensorCores can split the row grid.
_SINGLE_BLOCK_MAX_ROWS = 512
_ROW_TILE = 512  # 512 x 1536 f32 = 3 MiB per block -> comfortably VMEM-safe


def layernorm_kernel(x_ref, gamma_ref, beta_ref, o_ref):
    """Normalize each row of the (rows, C) block over the last (lane) dim."""
    x = x_ref[...].astype(jnp.float32)
    inv_c = jnp.float32(1.0 / x.shape[-1])  # compile-time constant, no divide
    # Fused single sweep: sum and sum-of-squares together (the two XLU lane
    # reductions are not serialized behind a separate centering pass).
    s1 = jnp.sum(x, axis=-1, keepdims=True)
    s2 = jnp.sum(x * x, axis=-1, keepdims=True)
    mean = s1 * inv_c
    # Biased variance (PyTorch LayerNorm).  E[x^2]-mean^2 is fine in f32 for
    # activation-scale data; cancellation only matters when |mean| >> std.
    var = s2 * inv_c - mean * mean
    inv = jax.lax.rsqrt(var + EPS)  # EUP rsqrt, eps inside sqrt like PyTorch
    # Fold the per-row inverse std into gamma once, then one FMA-style pass.
    scale = inv * gamma_ref[...]          # (R,1)*(1,C) -> (R,C)
    y = (x - mean) * scale + beta_ref[...]
    o_ref[...] = y.astype(o_ref.dtype)


def _single_block_call(x2d, gamma2d, beta2d):
    """Whole problem as one block: no grid, no pipeline plumbing."""
    R, C = x2d.shape
    return pl.pallas_call(
        layernorm_kernel,
        out_shape=jax.ShapeDtypeStruct((R, C), x2d.dtype),
        in_specs=[
            pl.BlockSpec((R, C), lambda: (0, 0)),
            pl.BlockSpec((1, C), lambda: (0, 0)),
            pl.BlockSpec((1, C), lambda: (0, 0)),
        ],
        out_specs=pl.BlockSpec((R, C), lambda: (0, 0)),
    )(x2d, gamma2d, beta2d)


def _tiled_call(x2d, gamma2d, beta2d):
    """Row-tiled path for large activations (VMEM-safe, megacore parallel)."""
    R, C = x2d.shape
    n_tiles = pl.cdiv(R, _ROW_TILE)
    Rp = n_tiles * _ROW_TILE
    if Rp != R:
        # Pad with zeros so every block is full; padded rows (var=0) just hit
        # rsqrt(eps) -> finite, and are sliced off afterwards.
        x2d = jnp.pad(x2d, ((0, Rp - R), (0, 0)))
    out = pl.pallas_call(
        layernorm_kernel,
        out_shape=jax.ShapeDtypeStruct((Rp, C), x2d.dtype),
        grid_spec=pl.GridSpec(
            grid=(n_tiles,),
            in_specs=[
                pl.BlockSpec((_ROW_TILE, C), lambda i: (i, 0)),
                pl.BlockSpec((1, C), lambda i: (0, 0)),  # gamma stays resident
                pl.BlockSpec((1, C), lambda i: (0, 0)),  # beta stays resident
            ],
            out_specs=pl.BlockSpec((_ROW_TILE, C), lambda i: (i, 0)),
        ),
        compiler_params=pltpu.CompilerParams(
            dimension_semantics=("parallel",)),
    )(x2d, gamma2d, beta2d)
    if Rp != R:
        out = out[:R]
    return out


def layernorm_lastdim(x, gamma, beta):
    """x: (..., C). LayerNorm over last dim with affine params gamma/beta (C,)."""
    orig_shape = x.shape
    C = orig_shape[-1]
    R = 1
    for d in orig_shape[:-1]:
        R *= d
    x2d = x.reshape(R, C)           # metadata-only reshape for contiguous NHWC
    gamma2d = gamma.reshape(1, C)
    beta2d = beta.reshape(1, C)
    if R <= _SINGLE_BLOCK_MAX_ROWS:
        out = _single_block_call(x2d, gamma2d, beta2d)
    else:
        out = _tiled_call(x2d, gamma2d, beta2d)
    return out.reshape(orig_shape)


class MPallas:
    """Mirrors the PyTorch module M: a single LayerNorm((1536,), eps=1e-6)."""

    def __init__(self, num_channels=1536):
        # PyTorch LayerNorm default init: weight=1, bias=0 (deterministic).
        self.gamma = jnp.ones((num_channels,), dtype=jnp.float32)
        self.beta = jnp.zeros((num_channels,), dtype=jnp.float32)

    def __call__(self, x):
        return layernorm_lastdim(x, self.gamma, self.beta)


def _ref_layernorm(x, gamma, beta):
    mean = jnp.mean(x, axis=-1, keepdims=True)
    var = jnp.mean((x - mean) ** 2, axis=-1, keepdims=True)
    return (x - mean) / jnp.sqrt(var + EPS) * gamma + beta


if __name__ == "__main__":
    key = jax.random.PRNGKey(0)
    model = MPallas(num_channels=1536)

    # 1) The exact shape the PyTorch module consumes: [1, 7, 7, 1536]
    #    (single-block fast path).
    k1, k2 = jax.random.split(key)
    x = jax.random.normal(k1, (1, 7, 7, 1536), dtype=jnp.float32)
    y = jax.block_until_ready(model(x))
    ref = _ref_layernorm(x, model.gamma, model.beta)
    assert y.shape == x.shape and y.dtype == x.dtype
    assert jnp.max(jnp.abs(y - ref)) < 1e-4

    # 2) A larger activation map to exercise the row-tiled / parallel path
    #    (1600 rows -> padded to 4 tiles of 512).
    x_big = jax.random.normal(k2, (2, 20, 40, 1536), dtype=jnp.float32)
    y_big = jax.block_until_ready(model(x_big))
    ref_big = _ref_layernorm(x_big, model.gamma, model.beta)
    assert y_big.shape == x_big.shape and y_big.dtype == x_big.dtype
    assert jnp.max(jnp.abs(y_big - ref_big)) < 1e-4

    print("KERNEL_OK")
</pallas_src>

<mosaic_0001>
module attributes {stable_mosaic.version = 11 : i64} {
  func.func @layernorm_kernel(%arg0: memref<49x1536xf32, #tpu.memory_space<vmem>>, %arg1: memref<1x1536xf32, #tpu.memory_space<vmem>>, %arg2: memref<1x1536xf32, #tpu.memory_space<vmem>>, %arg3: memref<49x1536xf32, #tpu.memory_space<vmem>>) attributes {dimension_semantics = [], scalar_prefetch = 0 : i64, scratch_operands = 0 : i64, tpu.core_type = #tpu.core_type<tc>} {
    %c0 = arith.constant 0 : index
    %c0_0 = arith.constant 0 : index
    %0 = vector.load %arg0[%c0, %c0_0] : memref<49x1536xf32, #tpu.memory_space<vmem>>, vector<49x1536xf32>
    %cst = arith.constant dense<0.000000e+00> : vector<49xf32>
    %1 = vector.multi_reduction <add>, %0, %cst [1] : vector<49x1536xf32> to vector<49xf32>
    %2 = vector.shape_cast %1 : vector<49xf32> to vector<49x1xf32>
    %3 = arith.mulf %0, %0 : vector<49x1536xf32>
    %cst_1 = arith.constant dense<0.000000e+00> : vector<49xf32>
    %4 = vector.multi_reduction <add>, %3, %cst_1 [1] : vector<49x1536xf32> to vector<49xf32>
    %5 = vector.shape_cast %4 : vector<49xf32> to vector<49x1xf32>
    %cst_2 = arith.constant 6.51041686E-4 : f32
    %6 = vector.broadcast %cst_2 : f32 to vector<49x1xf32>
    %7 = arith.mulf %2, %6 : vector<49x1xf32>
    %cst_3 = arith.constant 6.51041686E-4 : f32
    %8 = vector.broadcast %cst_3 : f32 to vector<49x1xf32>
    %9 = arith.mulf %5, %8 : vector<49x1xf32>
    %10 = arith.mulf %7, %7 : vector<49x1xf32>
    %11 = arith.subf %9, %10 : vector<49x1xf32>
    %cst_4 = arith.constant 9.99999997E-7 : f32
    %12 = vector.broadcast %cst_4 : f32 to vector<49x1xf32>
    %13 = arith.addf %11, %12 : vector<49x1xf32>
    %14 = math.rsqrt %13 : vector<49x1xf32>
    %c0_5 = arith.constant 0 : index
    %c0_6 = arith.constant 0 : index
    %15 = vector.load %arg1[%c0_5, %c0_6] : memref<1x1536xf32, #tpu.memory_space<vmem>>, vector<1x1536xf32>
    %16 = vector.broadcast %14 : vector<49x1xf32> to vector<49x1536xf32>
    %17 = vector.broadcast %15 : vector<1x1536xf32> to vector<49x1536xf32>
    %18 = arith.mulf %16, %17 : vector<49x1536xf32>
    %19 = vector.broadcast %7 : vector<49x1xf32> to vector<49x1536xf32>
    %20 = arith.subf %0, %19 : vector<49x1536xf32>
    %21 = arith.mulf %20, %18 : vector<49x1536xf32>
    %c0_7 = arith.constant 0 : index
    %c0_8 = arith.constant 0 : index
    %22 = vector.load %arg2[%c0_7, %c0_8] : memref<1x1536xf32, #tpu.memory_space<vmem>>, vector<1x1536xf32>
    %23 = vector.broadcast %22 : vector<1x1536xf32> to vector<49x1536xf32>
    %24 = arith.addf %21, %23 : vector<49x1536xf32>
    %c0_9 = arith.constant 0 : index
    %c0_10 = arith.constant 0 : index
    %25 = vector.load %arg3[%c0_9, %c0_10] : memref<49x1536xf32, #tpu.memory_space<vmem>>, vector<49x1536xf32>
    tpu.vector_store %arg3[%c0_9, %c0_10], %24 {strides = array<i32>} : memref<49x1536xf32, #tpu.memory_space<vmem>>, vector<49x1536xf32>,
    return
  }
}

</mosaic_0001>

<llo_original>
// kernel: tpu_custom_call.1
$region0: #{tpu_custom_call.1}
  #allocation0 [shape = 'u32[]', space=smem, size = 0x4, offset = 0x4, fixed_abs, tag = 'smem constant byte address 0x4 - core index']
  #allocation1 [shape = 'u32[144,128]{1,0:T(1,128)}', space=vmem, size = 0x12000, scoped, tag = 'internal scratch']
  %s0 = inlined_call_operand.hbm [shape: f32[49,1536], index: 0, kind: input, shape index: {}]
  %s1 = inlined_call_operand.hbm [shape: f32[1,1536], index: 1, kind: input, shape index: {}]
  %s2 = inlined_call_operand.hbm [shape: f32[1,1536], index: 2, kind: input, shape index: {}]
  %s3 = inlined_call_operand.hbm [shape: f32[49,1536], index: 3, kind: output, shape index: {}]
  %s4 = sld [smem:[#allocation0]]
  $region34: #{tpu_custom_call.1} parent=0
    _
  %s6 = ssub.s32 1, %s4
  %s7 = scalar_select 0, %s6, %s4
  $region1: #{tpu_custom_call.1} parent=0
    #allocation2 [shape = 'u8[344064]{0}', space=vmem, size = 0x54000, scoped, tag = 'input window, operand 0, single buffered']
    #allocation3 [shape = 's32[1]{0}', space=sflag, size = 0x4, scoped, tag = 'scoped memory for tpu_custom_call.1']
    #allocation4 [shape = 's32[1]{0}', space=sflag, size = 0x4, scoped, tag = 'scoped memory for tpu_custom_call.1']
    #allocation5 [shape = 'u8[6144]{0}', space=vmem, size = 0x1800, scoped, tag = 'input window, operand 1, single buffered']
    #allocation6 [shape = 's32[1]{0}', space=sflag, size = 0x4, scoped, tag = 'scoped memory for tpu_custom_call.1']
    #allocation7 [shape = 'u8[6144]{0}', space=vmem, size = 0x1800, scoped, tag = 'input window, operand 2, single buffered']
    #allocation8 [shape = 'u8[344064]{0}', space=vmem, size = 0x54000, scoped, tag = 'output window, operand 0, single buffered']
    %8 = vsyncpa [#allocation3], 0
    %9 = vsyncpa [#allocation6], 0
    %10 = vsyncpa [#allocation4], 0
    // Predicated region
    $region2: #{tpu_custom_call.1} parent=1 // pred_check
      _
    $region3: #{tpu_custom_call.1} parent=1 // pred_check_branch
      %12 = sbr.rel (0) target = $region5
    $region4: #{tpu_custom_call.1} parent=1 // pred_region
      %s14 = ssub.s32 10752, 10752
      %15 = vsyncadd [#allocation3], %s14
      %s16 = sshll.u32 [#allocation2], 4
      %s17 = int_to_ptr.vmem [resolvable:$true] %s16
      %22 = dma.hbm_to_vmem [thread:$0]  %s0, 10752, %s17, [#allocation3], 1536, 1536, 96
    $region5: #{tpu_custom_call.1} parent=1 // pred_fallthru
      _
    // Predicated region
    $region6: #{tpu_custom_call.1} parent=1 // pred_check
      _
    $region7: #{tpu_custom_call.1} parent=1 // pred_check_branch
      %24 = sbr.rel (0) target = $region9
    $region8: #{tpu_custom_call.1} parent=1 // pred_region
      %s26 = ssub.s32 192, 192
      %27 = vsyncadd [#allocation6], %s26
      %s29 = sshll.u32 [#allocation5], 4
      %s30 = int_to_ptr.vmem [resolvable:$true] %s29
      %32 = dma.hbm_to_vmem [thread:$0]  %s1, 192, %s30, [#allocation6]
    $region9: #{tpu_custom_call.1} parent=1 // pred_fallthru
      _
    // Predicated region
    $region10: #{tpu_custom_call.1} parent=1 // pred_check
      _
    $region11: #{tpu_custom_call.1} parent=1 // pred_check_branch
      %34 = sbr.rel (0) target = $region13
    $region12: #{tpu_custom_call.1} parent=1 // pred_region
      %s36 = ssub.s32 192, 192
      %37 = vsyncadd [#allocation6], %s36
      %s39 = sshll.u32 [#allocation7], 4
      %s40 = int_to_ptr.vmem [resolvable:$true] %s39
      %42 = dma.hbm_to_vmem [thread:$0]  %s2, 192, %s40, [#allocation6]
    $region13: #{tpu_custom_call.1} parent=1 // pred_fallthru
      _
    // Predicated region
    $region14: #{tpu_custom_call.1} parent=1 // pred_check
      _
    $region15: #{tpu_custom_call.1} parent=1 // pred_check_branch
      %44 = sbr.rel (0) target = $region17
    $region16: #{tpu_custom_call.1} parent=1 // pred_region
      %45 = dma.done [#allocation3], 10752
    $region17: #{tpu_custom_call.1} parent=1 // pred_fallthru
      _
    // Predicated region
    $region18: #{tpu_custom_call.1} parent=1 // pred_check
      _
    $region19: #{tpu_custom_call.1} parent=1 // pred_check_branch
      %47 = sbr.rel (0) target = $region21
    $region20: #{tpu_custom_call.1} parent=1 // pred_region
      %48 = dma.done [#allocation6], 192
    $region21: #{tpu_custom_call.1} parent=1 // pred_fallthru
      _
    // Predicated region
    $region22: #{tpu_custom_call.1} parent=1 // pred_check
      _
    $region23: #{tpu_custom_call.1} parent=1 // pred_check_branch
      %50 = sbr.rel (0) target = $region25
    $region24: #{tpu_custom_call.1} parent=1 // pred_region
      %51 = dma.done [#allocation6], 192
    $region25: #{tpu_custom_call.1} parent=1 // pred_fallthru
      _
    %v52 = vld [vmem:[#allocation2] sm:$0xff]
    %v53 = vld [vmem:[#allocation2 + $0x8] sm:$0xff]
    %v54 = vld [vmem:[#allocation2 + $0x10] sm:$0xff]
    %v55 = vld [vmem:[#allocation2 + $0x18] sm:$0xff]
    %v56 = vld [vmem:[#allocation2 + $0x20] sm:$0xff]
    %v57 = vld [vmem:[#allocation2 + $0x28] sm:$0xff]
    %v58 = vld [vmem:[#allocation2 + $0x30] sm:$0xff]
    %v59 = vld [vmem:[#allocation2 + $0x38] sm:$0xff]
    %v60 = vld [vmem:[#allocation2 + $0x40] sm:$0xff]
    %v61 = vld [vmem:[#allocation2 + $0x48] sm:$0xff]
    %v62 = vld [vmem:[#allocation2 + $0x50] sm:$0xff]
    %v63 = vld [vmem:[#allocation2 + $0x58] sm:$0xff]
    %v64 = vld [vmem:[#allocation2 + $0x60] sm:$0xff]
    %v65 = vld [vmem:[#allocation2 + $0x68] sm:$0xff]
    %v66 = vld [vmem:[#allocation2 + $0x70] sm:$0xff]
    %v67 = vld [vmem:[#allocation2 + $0x78] sm:$0xff]
    %v68 = vld [vmem:[#allocation2 + $0x80] sm:$0xff]
    %v69 = vld [vmem:[#allocation2 + $0x88] sm:$0xff]
    %v70 = vld [vmem:[#allocation2 + $0x90] sm:$0xff]
    %v71 = vld [vmem:[#allocation2 + $0x98] sm:$0xff]
    %v72 = vld [vmem:[#allocation2 + $0xa0] sm:$0xff]
    %v73 = vld [vmem:[#allocation2 + $0xa8] sm:$0xff]
    %v74 = vld [vmem:[#allocation2 + $0xb0] sm:$0xff]
    %v75 = vld [vmem:[#allocation2 + $0xb8] sm:$0xff]
    %v76 = vld [vmem:[#allocation2 + $0xc0] sm:$0xff]
    %v77 = vld [vmem:[#allocation2 + $0xc8] sm:$0xff]
    %v78 = vld [vmem:[#allocation2 + $0xd0] sm:$0xff]
    %v79 = vld [vmem:[#allocation2 + $0xd8] sm:$0xff]
    %v80 = vld [vmem:[#allocation2 + $0xe0] sm:$0xff]
    %v81 = vld [vmem:[#allocation2 + $0xe8] sm:$0xff]
    %v82 = vld [vmem:[#allocation2 + $0xf0] sm:$0xff]
    %v83 = vld [vmem:[#allocation2 + $0xf8] sm:$0xff]
    %v84 = vld [vmem:[#allocation2 + $0x100] sm:$0xff]
    %v85 = vld [vmem:[#allocation2 + $0x108] sm:$0xff]
    %v86 = vld [vmem:[#allocation2 + $0x110] sm:$0xff]
    %v87 = vld [vmem:[#allocation2 + $0x118] sm:$0xff]
    %v88 = vld [vmem:[#allocation2 + $0x120] sm:$0xff]
    %v89 = vld [vmem:[#allocation2 + $0x128] sm:$0xff]
    %v90 = vld [vmem:[#allocation2 + $0x130] sm:$0xff]
    %v91 = vld [vmem:[#allocation2 + $0x138] sm:$0xff]
    %v92 = vld [vmem:[#allocation2 + $0x140] sm:$0xff]
    %v93 = vld [vmem:[#allocation2 + $0x148] sm:$0xff]
    %v94 = vld [vmem:[#allocation2 + $0x150] sm:$0xff]
    %v95 = vld [vmem:[#allocation2 + $0x158] sm:$0xff]
    %v96 = vld [vmem:[#allocation2 + $0x160] sm:$0xff]
    %v97 = vld [vmem:[#allocation2 + $0x168] sm:$0xff]
    %v98 = vld [vmem:[#allocation2 + $0x170] sm:$0xff]
    %v99 = vld [vmem:[#allocation2 + $0x178] sm:$0xff]
    %v100 = vld [vmem:[#allocation2 + $0x180] sm:$0xff]
    %v101 = vld [vmem:[#allocation2 + $0x188] sm:$0xff]
    %v102 = vld [vmem:[#allocation2 + $0x190] sm:$0xff]
    %v103 = vld [vmem:[#allocation2 + $0x198] sm:$0xff]
    %v104 = vld [vmem:[#allocation2 + $0x1a0] sm:$0xff]
    %v105 = vld [vmem:[#allocation2 + $0x1a8] sm:$0xff]
    %v106 = vld [vmem:[#allocation2 + $0x1b0] sm:$0xff]
    %v107 = vld [vmem:[#allocation2 + $0x1b8] sm:$0xff]
    %v108 = vld [vmem:[#allocation2 + $0x1c0] sm:$0xff]
    %v109 = vld [vmem:[#allocation2 + $0x1c8] sm:$0xff]
    %v110 = vld [vmem:[#allocation2 + $0x1d0] sm:$0xff]
    %v111 = vld [vmem:[#allocation2 + $0x1d8] sm:$0xff]
    %v112 = vld [vmem:[#allocation2 + $0x1e0] sm:$0xff]
    %v113 = vld [vmem:[#allocation2 + $0x1e8] sm:$0xff]
    %v114 = vld [vmem:[#allocation2 + $0x1f0] sm:$0xff]
    %v115 = vld [vmem:[#allocation2 + $0x1f8] sm:$0xff]
    %v116 = vld [vmem:[#allocation2 + $0x200] sm:$0xff]
    %v117 = vld [vmem:[#allocation2 + $0x208] sm:$0xff]
    %v118 = vld [vmem:[#allocation2 + $0x210] sm:$0xff]
    %v119 = vld [vmem:[#allocation2 + $0x218] sm:$0xff]
    %v120 = vld [vmem:[#allocation2 + $0x220] sm:$0xff]
    %v121 = vld [vmem:[#allocation2 + $0x228] sm:$0xff]
    %v122 = vld [vmem:[#allocation2 + $0x230] sm:$0xff]
    %v123 = vld [vmem:[#allocation2 + $0x238] sm:$0xff]
    %v124 = vld [vmem:[#allocation2 + $0x240] sm:$0x1]
    %v125 = vld [vmem:[#allocation2 + $0x248] sm:$0x1]
    %v126 = vld [vmem:[#allocation2 + $0x250] sm:$0x1]
    %v127 = vld [vmem:[#allocation2 + $0x258] sm:$0x1]
    %v128 = vld [vmem:[#allocation2 + $0x260] sm:$0x1]
    %v129 = vld [vmem:[#allocation2 + $0x268] sm:$0x1]
    %v130 = vld [vmem:[#allocation2 + $0x270] sm:$0x1]
    %v131 = vld [vmem:[#allocation2 + $0x278] sm:$0x1]
    %v132 = vld [vmem:[#allocation2 + $0x280] sm:$0x1]
    %v133 = vld [vmem:[#allocation2 + $0x288] sm:$0x1]
    %v134 = vld [vmem:[#allocation2 + $0x290] sm:$0x1]
    %v135 = vld [vmem:[#allocation2 + $0x298] sm:$0x1]
    %v136 = vadd.f32 %v52, %v53
    %v137 = vadd.f32 %v136, %v54
    %v138 = vadd.f32 %v137, %v55
    %v139 = vadd.f32 %v138, %v56
    %v140 = vadd.f32 %v139, %v57
    %v141 = vadd.f32 %v140, %v58
    %v142 = vadd.f32 %v141, %v59
    %v143 = vadd.f32 %v142, %v60
    %v144 = vadd.f32 %v143, %v61
    %v145 = vadd.f32 %v144, %v62
    %v146 = vadd.f32 %v145, %v63
    %147 = vadd.xlane.f32.xlu0 %v146
    %v148 = vpop.xlane.xlu0 %147
    %v149 = vadd.f32 %v64, %v65
    %v150 = vadd.f32 %v149, %v66
    %v151 = vadd.f32 %v150, %v67
    %v152 = vadd.f32 %v151, %v68
    %v153 = vadd.f32 %v152, %v69
    %v154 = vadd.f32 %v153, %v70
    %v155 = vadd.f32 %v154, %v71
    %v156 = vadd.f32 %v155, %v72
    %v157 = vadd.f32 %v156, %v73
    %v158 = vadd.f32 %v157, %v74
    %v159 = vadd.f32 %v158, %v75
    %160 = vadd.xlane.f32.xlu0 %v159
    %v161 = vpop.xlane.xlu0 %160
    %v162 = vadd.f32 %v76, %v77
    %v163 = vadd.f32 %v162, %v78
    %v164 = vadd.f32 %v163, %v79
    %v165 = vadd.f32 %v164, %v80
    %v166 = vadd.f32 %v165, %v81
    %v167 = vadd.f32 %v166, %v82
    %v168 = vadd.f32 %v167, %v83
    %v169 = vadd.f32 %v168, %v84
    %v170 = vadd.f32 %v169, %v85
    %v171 = vadd.f32 %v170, %v86
    %v172 = vadd.f32 %v171, %v87
    %173 = vadd.xlane.f32.xlu0 %v172
    %v174 = vpop.xlane.xlu0 %173
    %v175 = vadd.f32 %v88, %v89
    %v176 = vadd.f32 %v175, %v90
    %v177 = vadd.f32 %v176, %v91
    %v178 = vadd.f32 %v177, %v92
    %v179 = vadd.f32 %v178, %v93
    %v180 = vadd.f32 %v179, %v94
    %v181 = vadd.f32 %v180, %v95
    %v182 = vadd.f32 %v181, %v96
    %v183 = vadd.f32 %v182, %v97
    %v184 = vadd.f32 %v183, %v98
    %v185 = vadd.f32 %v184, %v99
    %186 = vadd.xlane.f32.xlu0 %v185
    %v187 = vpop.xlane.xlu0 %186
    %v188 = vadd.f32 %v100, %v101
    %v189 = vadd.f32 %v188, %v102
    %v190 = vadd.f32 %v189, %v103
    %v191 = vadd.f32 %v190, %v104
    %v192 = vadd.f32 %v191, %v105
    %v193 = vadd.f32 %v192, %v106
    %v194 = vadd.f32 %v193, %v107
    %v195 = vadd.f32 %v194, %v108
    %v196 = vadd.f32 %v195, %v109
    %v197 = vadd.f32 %v196, %v110
    %v198 = vadd.f32 %v197, %v111
    %199 = vadd.xlane.f32.xlu0 %v198
    %v200 = vpop.xlane.xlu0 %199
    %v201 = vadd.f32 %v112, %v113
    %v202 = vadd.f32 %v201, %v114
    %v203 = vadd.f32 %v202, %v115
    %v204 = vadd.f32 %v203, %v116
    %v205 = vadd.f32 %v204, %v117
    %v206 = vadd.f32 %v205, %v118
    %v207 = vadd.f32 %v206, %v119
    %v208 = vadd.f32 %v207, %v120
    %v209 = vadd.f32 %v208, %v121
    %v210 = vadd.f32 %v209, %v122
    %v211 = vadd.f32 %v210, %v123
    %212 = vadd.xlane.f32.xlu0 %v211
    %v213 = vpop.xlane.xlu0 %212
    %vm214 = vcmask 1040384
    %v215 = vsel %vm214, %v124, 0.0
    %v216 = vsel %vm214, %v125, 0.0
    %v217 = vadd.f32 %v215, %v216
    %v218 = vsel %vm214, %v126, 0.0
    %v219 = vadd.f32 %v217, %v218
    %v220 = vsel %vm214, %v127, 0.0
    %v221 = vadd.f32 %v219, %v220
    %v222 = vsel %vm214, %v128, 0.0
    %v223 = vadd.f32 %v221, %v222
    %v224 = vsel %vm214, %v129, 0.0
    %v225 = vadd.f32 %v223, %v224
    %v226 = vsel %vm214, %v130, 0.0
    %v227 = vadd.f32 %v225, %v226
    %v228 = vsel %vm214, %v131, 0.0
    %v229 = vadd.f32 %v227, %v228
    %v230 = vsel %vm214, %v132, 0.0
    %v231 = vadd.f32 %v229, %v230
    %v232 = vsel %vm214, %v133, 0.0
    %v233 = vadd.f32 %v231, %v232
    %v234 = vsel %vm214, %v134, 0.0
    %v235 = vadd.f32 %v233, %v234
    %v236 = vsel %vm214, %v135, 0.0
    %v237 = vadd.f32 %v235, %v236
    %238 = vadd.xlane.f32.xlu0 %v237
    %v239 = vpop.xlane.xlu0 %238
    %v240 = vmul.f32 %v52, %v52
    %v241 = vmul.f32 %v53, %v53
    %v242 = vmul.f32 %v54, %v54
    %v243 = vmul.f32 %v55, %v55
    %v244 = vmul.f32 %v56, %v56
    %v245 = vmul.f32 %v57, %v57
    %v246 = vmul.f32 %v58, %v58
    %v247 = vmul.f32 %v59, %v59
    %v248 = vmul.f32 %v60, %v60
    %v249 = vmul.f32 %v61, %v61
    %v250 = vmul.f32 %v62, %v62
    %v251 = vmul.f32 %v63, %v63
    %v252 = vmul.f32 %v64, %v64
    %v253 = vmul.f32 %v65, %v65
    %v254 = vmul.f32 %v66, %v66
    %v255 = vmul.f32 %v67, %v67
    %v256 = vmul.f32 %v68, %v68
    %v257 = vmul.f32 %v69, %v69
    %v258 = vmul.f32 %v70, %v70
    %v259 = vmul.f32 %v71, %v71
    %v260 = vmul.f32 %v72, %v72
    %v261 = vmul.f32 %v73, %v73
    %v262 = vmul.f32 %v74, %v74
    %v263 = vmul.f32 %v75, %v75
    %v264 = vmul.f32 %v76, %v76
    %v265 = vmul.f32 %v77, %v77
    %v266 = vmul.f32 %v78, %v78
    %v267 = vmul.f32 %v79, %v79
    %v268 = vmul.f32 %v80, %v80
    %v269 = vmul.f32 %v81, %v81
    %v270 = vmul.f32 %v82, %v82
    %v271 = vmul.f32 %v83, %v83
    %v272 = vmul.f32 %v84, %v84
    %v273 = vmul.f32 %v85, %v85
    %v274 = vmul.f32 %v86, %v86
    %v275 = vmul.f32 %v87, %v87
    %v276 = vmul.f32 %v88, %v88
    %v277 = vmul.f32 %v89, %v89
    %v278 = vmul.f32 %v90, %v90
    %v279 = vmul.f32 %v91, %v91
    %v280 = vmul.f32 %v92, %v92
    %v281 = vmul.f32 %v93, %v93
    %v282 = vmul.f32 %v94, %v94
    %v283 = vmul.f32 %v95, %v95
    %v284 = vmul.f32 %v96, %v96
    %v285 = vmul.f32 %v97, %v97
    %v286 = vmul.f32 %v98, %v98
    %v287 = vmul.f32 %v99, %v99
    %v288 = vmul.f32 %v100, %v100
    %v289 = vmul.f32 %v101, %v101
    %v290 = vmul.f32 %v102, %v102
    %v291 = vmul.f32 %v103, %v103
    %v292 = vmul.f32 %v104, %v104
    %v293 = vmul.f32 %v105, %v105
    %v294 = vmul.f32 %v106, %v106
    %v295 = vmul.f32 %v107, %v107
    %v296 = vmul.f32 %v108, %v108
    %v297 = vmul.f32 %v109, %v109
    %v298 = vmul.f32 %v110, %v110
    %v299 = vmul.f32 %v111, %v111
    %v300 = vmul.f32 %v112, %v112
    %v301 = vmul.f32 %v113, %v113
    %v302 = vmul.f32 %v114, %v114
    %v303 = vmul.f32 %v115, %v115
    %v304 = vmul.f32 %v116, %v116
    %v305 = vmul.f32 %v117, %v117
    %v306 = vmul.f32 %v118, %v118
    %v307 = vmul.f32 %v119, %v119
    %v308 = vmul.f32 %v120, %v120
    %v309 = vmul.f32 %v121, %v121
    %v310 = vmul.f32 %v122, %v122
    %v311 = vmul.f32 %v123, %v123
    %v312 = vmul.f32 %v124, %v124
    %v313 = vmul.f32 %v125, %v125
    %v314 = vmul.f32 %v126, %v126
    %v315 = vmul.f32 %v127, %v127
    %v316 = vmul.f32 %v128, %v128
    %v317 = vmul.f32 %v129, %v129
    %v318 = vmul.f32 %v130, %v130
    %v319 = vmul.f32 %v131, %v131
    %v320 = vmul.f32 %v132, %v132
    %v321 = vmul.f32 %v133, %v133
    %v322 = vmul.f32 %v134, %v134
    %v323 = vmul.f32 %v135, %v135
    %v324 = vadd.f32 %v240, %v241
    %v325 = vadd.f32 %v324, %v242
    %v326 = vadd.f32 %v325, %v243
    %v327 = vadd.f32 %v326, %v244
    %v328 = vadd.f32 %v327, %v245
    %v329 = vadd.f32 %v328, %v246
    %v330 = vadd.f32 %v329, %v247
    %v331 = vadd.f32 %v330, %v248
    %v332 = vadd.f32 %v331, %v249
    %v333 = vadd.f32 %v332, %v250
    %v334 = vadd.f32 %v333, %v251
    %335 = vadd.xlane.f32.xlu0 %v334
    %v336 = vpop.xlane.xlu0 %335
    %v337 = vadd.f32 %v252, %v253
    %v338 = vadd.f32 %v337, %v254
    %v339 = vadd.f32 %v338, %v255
    %v340 = vadd.f32 %v339, %v256
    %v341 = vadd.f32 %v340, %v257
    %v342 = vadd.f32 %v341, %v258
    %v343 = vadd.f32 %v342, %v259
    %v344 = vadd.f32 %v343, %v260
    %v345 = vadd.f32 %v344, %v261
    %v346 = vadd.f32 %v345, %v262
    %v347 = vadd.f32 %v346, %v263
    %348 = vadd.xlane.f32.xlu0 %v347
    %v349 = vpop.xlane.xlu0 %348
    %v350 = vadd.f32 %v264, %v265
    %v351 = vadd.f32 %v350, %v266
    %v352 = vadd.f32 %v351, %v267
    %v353 = vadd.f32 %v352, %v268
    %v354 = vadd.f32 %v353, %v269
    %v355 = vadd.f32 %v354, %v270
    %v356 = vadd.f32 %v355, %v271
    %v357 = vadd.f32 %v356, %v272
    %v358 = vadd.f32 %v357, %v273
    %v359 = vadd.f32 %v358, %v274
    %v360 = vadd.f32 %v359, %v275
    %361 = vadd.xlane.f32.xlu0 %v360
    %v362 = vpop.xlane.xlu0 %361
    %v363 = vadd.f32 %v276, %v277
    %v364 = vadd.f32 %v363, %v278
    %v365 = vadd.f32 %v364, %v279
    %v366 = vadd.f32 %v365, %v280
    %v367 = vadd.f32 %v366, %v281
    %v368 = vadd.f32 %v367, %v282
    %v369 = vadd.f32 %v368, %v283
    %v370 = vadd.f32 %v369, %v284
    %v371 = vadd.f32 %v370, %v285
    %v372 = vadd.f32 %v371, %v286
    %v373 = vadd.f32 %v372, %v287
    %374 = vadd.xlane.f32.xlu0 %v373
    %v375 = vpop.xlane.xlu0 %374
    %v376 = vadd.f32 %v288, %v289
    %v377 = vadd.f32 %v376, %v290
    %v378 = vadd.f32 %v377, %v291
    %v379 = vadd.f32 %v378, %v292
    %v380 = vadd.f32 %v379, %v293
    %v381 = vadd.f32 %v380, %v294
    %v382 = vadd.f32 %v381, %v295
    %v383 = vadd.f32 %v382, %v296
    %v384 = vadd.f32 %v383, %v297
    %v385 = vadd.f32 %v384, %v298
    %v386 = vadd.f32 %v385, %v299
    %387 = vadd.xlane.f32.xlu0 %v386
    %v388 = vpop.xlane.xlu0 %387
    %v389 = vadd.f32 %v300, %v301
    %v390 = vadd.f32 %v389, %v302
    %v391 = vadd.f32 %v390, %v303
    %v392 = vadd.f32 %v391, %v304
    %v393 = vadd.f32 %v392, %v305
    %v394 = vadd.f32 %v393, %v306
    %v395 = vadd.f32 %v394, %v307
    %v396 = vadd.f32 %v395, %v308
    %v397 = vadd.f32 %v396, %v309
    %v398 = vadd.f32 %v397, %v310
    %v399 = vadd.f32 %v398, %v311
    %400 = vadd.xlane.f32.xlu0 %v399
    %v401 = vpop.xlane.xlu0 %400
    %v402 = vsel %vm214, %v312, 0.0
    %v403 = vsel %vm214, %v313, 0.0
    %v404 = vadd.f32 %v402, %v403
    %v405 = vsel %vm214, %v314, 0.0
    %v406 = vadd.f32 %v404, %v405
    %v407 = vsel %vm214, %v315, 0.0
    %v408 = vadd.f32 %v406, %v407
    %v409 = vsel %vm214, %v316, 0.0
    %v410 = vadd.f32 %v408, %v409
    %v411 = vsel %vm214, %v317, 0.0
    %v412 = vadd.f32 %v410, %v411
    %v413 = vsel %vm214, %v318, 0.0
    %v414 = vadd.f32 %v412, %v413
    %v415 = vsel %vm214, %v319, 0.0
    %v416 = vadd.f32 %v414, %v415
    %v417 = vsel %vm214, %v320, 0.0
    %v418 = vadd.f32 %v416, %v417
    %v419 = vsel %vm214, %v321, 0.0
    %v420 = vadd.f32 %v418, %v419
    %v421 = vsel %vm214, %v322, 0.0
    %v422 = vadd.f32 %v420, %v421
    %v423 = vsel %vm214, %v323, 0.0
    %v424 = vadd.f32 %v422, %v423
    %425 = vadd.xlane.f32.xlu0 %v424
    %v426 = vpop.xlane.xlu0 %425
    %v427 = vmul.f32 %v148, 0.0006510417
    %v428 = vmul.f32 %v161, 0.0006510417
    %v429 = vmul.f32 %v174, 0.0006510417
    %v430 = vmul.f32 %v187, 0.0006510417
    %v431 = vmul.f32 %v200, 0.0006510417
    %v432 = vmul.f32 %v213, 0.0006510417
    %v433 = vmul.f32 %v239, 0.0006510417
    %v434 = vmul.f32 %v336, 0.0006510417
    %v435 = vmul.f32 %v349, 0.0006510417
    %v436 = vmul.f32 %v362, 0.0006510417
    %v437 = vmul.f32 %v375, 0.0006510417
    %v438 = vmul.f32 %v388, 0.0006510417
    %v439 = vmul.f32 %v401, 0.0006510417
    %v440 = vmul.f32 %v426, 0.0006510417
    %v441 = vmul.f32 %v427, %v427
    %v442 = vmul.f32 %v428, %v428
    %v443 = vmul.f32 %v429, %v429
    %v444 = vmul.f32 %v430, %v430
    %v445 = vmul.f32 %v431, %v431
    %v446 = vmul.f32 %v432, %v432
    %v447 = vmul.f32 %v433, %v433
    %v448 = vsub.f32 %v434, %v441
    %v449 = vsub.f32 %v435, %v442
    %v450 = vsub.f32 %v436, %v443
    %v451 = vsub.f32 %v437, %v444
    %v452 = vsub.f32 %v438, %v445
    %v453 = vsub.f32 %v439, %v446
    %v454 = vsub.f32 %v440, %v447
    %v455 = vadd.f32 %v448, 1e-06
    %v456 = vadd.f32 %v449, 1e-06
    %v457 = vadd.f32 %v450, 1e-06
    %v458 = vadd.f32 %v451, 1e-06
    %v459 = vadd.f32 %v452, 1e-06
    %v460 = vadd.f32 %v453, 1e-06
    %v461 = vadd.f32 %v454, 1e-06
    %v462 = vrsqrt.pop %v455
    %v463 = vrsqrt.pop %v456
    %v464 = vrsqrt.pop %v457
    %v465 = vrsqrt.pop %v458
    %v466 = vrsqrt.pop %v459
    %v467 = vrsqrt.pop %v460
    %v468 = vrsqrt.pop %v461
    %v469 = vld [vmem:[#allocation5] sm:$0xff]
    %v470 = vld [vmem:[#allocation5 + $0x8] sm:$0xf]
    %v473 = vlaneseq
    %v474 = vshrl.u32 %v473, 7
    %v475 = vsub.s32 0, %v474
    %v476 = vrot.slane %v469, %v475
    %v477 = vlaneseq
    %v478 = vshrl.u32 %v477, 7
    %v479 = vsub.s32 1, %v478
    %v480 = vrot.slane %v469, %v479
    %v481 = vlaneseq
    %v482 = vshrl.u32 %v481, 7
    %v483 = vsub.s32 2, %v482
    %v484 = vrot.slane %v469, %v483
    %v485 = vlaneseq
    %v486 = vshrl.u32 %v485, 7
    %v487 = vsub.s32 3, %v486
    %v488 = vrot.slane %v469, %v487
    %v489 = vlaneseq
    %v490 = vshrl.u32 %v489, 7
    %v491 = vsub.s32 4, %v490
    %v492 = vrot.slane %v469, %v491
    %v493 = vlaneseq
    %v494 = vshrl.u32 %v493, 7
    %v495 = vsub.s32 5, %v494
    %v496 = vrot.slane %v469, %v495
    %v497 = vlaneseq
    %v498 = vshrl.u32 %v497, 7
    %v499 = vsub.s32 6, %v498
    %v500 = vrot.slane %v469, %v499
    %v501 = vlaneseq
    %v502 = vshrl.u32 %v501, 7
    %v503 = vsub.s32 7, %v502
    %v504 = vrot.slane %v469, %v503
    %v505 = vlaneseq
    %v506 = vshrl.u32 %v505, 7
    %v507 = vsub.s32 0, %v506
    %v508 = vrot.slane %v470, %v507
    %v509 = vlaneseq
    %v510 = vshrl.u32 %v509, 7
    %v511 = vsub.s32 1, %v510
    %v512 = vrot.slane %v470, %v511
    %v513 = vlaneseq
    %v514 = vshrl.u32 %v513, 7
    %v515 = vsub.s32 2, %v514
    %v516 = vrot.slane %v470, %v515
    %v517 = vlaneseq
    %v518 = vshrl.u32 %v517, 7
    %v519 = vsub.s32 3, %v518
    %v520 = vrot.slane %v470, %v519
    %v533 = vmul.f32 %v462, %v476
    %v534 = vmul.f32 %v462, %v480
    %v535 = vmul.f32 %v462, %v484
    %v536 = vmul.f32 %v462, %v488
    %v537 = vmul.f32 %v462, %v492
    %v538 = vmul.f32 %v462, %v496
    %v539 = vmul.f32 %v462, %v500
    %v540 = vmul.f32 %v462, %v504
    %v541 = vmul.f32 %v462, %v508
    %v542 = vmul.f32 %v462, %v512
    %v543 = vmul.f32 %v462, %v516
    %v544 = vmul.f32 %v462, %v520
    %v545 = vmul.f32 %v463, %v476
    %v546 = vmul.f32 %v463, %v480
    %v547 = vmul.f32 %v463, %v484
    %v548 = vmul.f32 %v463, %v488
    %v549 = vmul.f32 %v463, %v492
    %v550 = vmul.f32 %v463, %v496
    %v551 = vmul.f32 %v463, %v500
    %v552 = vmul.f32 %v463, %v504
    %v553 = vmul.f32 %v463, %v508
    %v554 = vmul.f32 %v463, %v512
    %v555 = vmul.f32 %v463, %v516
    %v556 = vmul.f32 %v463, %v520
    %v557 = vmul.f32 %v464, %v476
    %v558 = vmul.f32 %v464, %v480
    %v559 = vmul.f32 %v464, %v484
    %v560 = vmul.f32 %v464, %v488
    %v561 = vmul.f32 %v464, %v492
    %v562 = vmul.f32 %v464, %v496
    %v563 = vmul.f32 %v464, %v500
    %v564 = vmul.f32 %v464, %v504
    %v565 = vmul.f32 %v464, %v508
    %v566 = vmul.f32 %v464, %v512
    %v567 = vmul.f32 %v464, %v516
    %v568 = vmul.f32 %v464, %v520
    %v569 = vmul.f32 %v465, %v476
    %v570 = vmul.f32 %v465, %v480
    %v571 = vmul.f32 %v465, %v484
    %v572 = vmul.f32 %v465, %v488
    %v573 = vmul.f32 %v465, %v492
    %v574 = vmul.f32 %v465, %v496
    %v575 = vmul.f32 %v465, %v500
    %v576 = vmul.f32 %v465, %v504
    %v577 = vmul.f32 %v465, %v508
    %v578 = vmul.f32 %v465, %v512
    %v579 = vmul.f32 %v465, %v516
    %v580 = vmul.f32 %v465, %v520
    %v581 = vmul.f32 %v466, %v476
    %v582 = vmul.f32 %v466, %v480
    %v583 = vmul.f32 %v466, %v484
    %v584 = vmul.f32 %v466, %v488
    %v585 = vmul.f32 %v466, %v492
    %v586 = vmul.f32 %v466, %v496
    %v587 = vmul.f32 %v466, %v500
    %v588 = vmul.f32 %v466, %v504
    %v589 = vmul.f32 %v466, %v508
    %v590 = vmul.f32 %v466, %v512
    %v591 = vmul.f32 %v466, %v516
    %v592 = vmul.f32 %v466, %v520
    %v593 = vmul.f32 %v467, %v476
    %v594 = vmul.f32 %v467, %v480
    %v595 = vmul.f32 %v467, %v484
    %v596 = vmul.f32 %v467, %v488
    %v597 = vmul.f32 %v467, %v492
    %v598 = vmul.f32 %v467, %v496
    %v599 = vmul.f32 %v467, %v500
    %v600 = vmul.f32 %v467, %v504
    %v601 = vmul.f32 %v467, %v508
    %v602 = vmul.f32 %v467, %v512
    %v603 = vmul.f32 %v467, %v516
    %v604 = vmul.f32 %v467, %v520
    %v605 = vmul.f32 %v468, %v476
    %v606 = vmul.f32 %v468, %v480
    %v607 = vmul.f32 %v468, %v484
    %v608 = vmul.f32 %v468, %v488
    %v609 = vmul.f32 %v468, %v492
    %v610 = vmul.f32 %v468, %v496
    %v611 = vmul.f32 %v468, %v500
    %v612 = vmul.f32 %v468, %v504
    %v613 = vmul.f32 %v468, %v508
    %v614 = vmul.f32 %v468, %v512
    %v615 = vmul.f32 %v468, %v516
    %v616 = vmul.f32 %v468, %v520
    %v617 = vsub.f32 %v52, %v427
    %v618 = vsub.f32 %v53, %v427
    %v619 = vsub.f32 %v54, %v427
    %v620 = vsub.f32 %v55, %v427
    %v621 = vsub.f32 %v56, %v427
    %v622 = vsub.f32 %v57, %v427
    %v623 = vsub.f32 %v58, %v427
    %v624 = vsub.f32 %v59, %v427
    %v625 = vsub.f32 %v60, %v427
    %v626 = vsub.f32 %v61, %v427
    %v627 = vsub.f32 %v62, %v427
    %v628 = vsub.f32 %v63, %v427
    %v629 = vsub.f32 %v64, %v428
    %v630 = vsub.f32 %v65, %v428
    %v631 = vsub.f32 %v66, %v428
    %v632 = vsub.f32 %v67, %v428
    %v633 = vsub.f32 %v68, %v428
    %v634 = vsub.f32 %v69, %v428
    %v635 = vsub.f32 %v70, %v428
    %v636 = vsub.f32 %v71, %v428
    %v637 = vsub.f32 %v72, %v428
    %v638 = vsub.f32 %v73, %v428
    %v639 = vsub.f32 %v74, %v428
    %v640 = vsub.f32 %v75, %v428
    %v641 = vsub.f32 %v76, %v429
    %v642 = vsub.f32 %v77, %v429
    %v643 = vsub.f32 %v78, %v429
    %v644 = vsub.f32 %v79, %v429
    %v645 = vsub.f32 %v80, %v429
    %v646 = vsub.f32 %v81, %v429
    %v647 = vsub.f32 %v82, %v429
    %v648 = vsub.f32 %v83, %v429
    %v649 = vsub.f32 %v84, %v429
    %v650 = vsub.f32 %v85, %v429
    %v651 = vsub.f32 %v86, %v429
    %v652 = vsub.f32 %v87, %v429
    %v653 = vsub.f32 %v88, %v430
    %v654 = vsub.f32 %v89, %v430
    %v655 = vsub.f32 %v90, %v430
    %v656 = vsub.f32 %v91, %v430
    %v657 = vsub.f32 %v92, %v430
    %v658 = vsub.f32 %v93, %v430
    %v659 = vsub.f32 %v94, %v430
    %v660 = vsub.f32 %v95, %v430
    %v661 = vsub.f32 %v96, %v430
    %v662 = vsub.f32 %v97, %v430
    %v663 = vsub.f32 %v98, %v430
    %v664 = vsub.f32 %v99, %v430
    %v665 = vsub.f32 %v100, %v431
    %v666 = vsub.f32 %v101, %v431
    %v667 = vsub.f32 %v102, %v431
    %v668 = vsub.f32 %v103, %v431
    %v669 = vsub.f32 %v104, %v431
    %v670 = vsub.f32 %v105, %v431
    %v671 = vsub.f32 %v106, %v431
    %v672 = vsub.f32 %v107, %v431
    %v673 = vsub.f32 %v108, %v431
    %v674 = vsub.f32 %v109, %v431
    %v675 = vsub.f32 %v110, %v431
    %v676 = vsub.f32 %v111, %v431
    %v677 = vsub.f32 %v112, %v432
    %v678 = vsub.f32 %v113, %v432
    %v679 = vsub.f32 %v114, %v432
    %v680 = vsub.f32 %v115, %v432
    %v681 = vsub.f32 %v116, %v432
    %v682 = vsub.f32 %v117, %v432
    %v683 = vsub.f32 %v118, %v432
    %v684 = vsub.f32 %v119, %v432
    %v685 = vsub.f32 %v120, %v432
    %v686 = vsub.f32 %v121, %v432
    %v687 = vsub.f32 %v122, %v432
    %v688 = vsub.f32 %v123, %v432
    %v689 = vsub.f32 %v124, %v433
    %v690 = vsub.f32 %v125, %v433
    %v691 = vsub.f32 %v126, %v433
    %v692 = vsub.f32 %v127, %v433
    %v693 = vsub.f32 %v128, %v433
    %v694 = vsub.f32 %v129, %v433
    %v695 = vsub.f32 %v130, %v433
    %v696 = vsub.f32 %v131, %v433
    %v697 = vsub.f32 %v132, %v433
    %v698 = vsub.f32 %v133, %v433
    %v699 = vsub.f32 %v134, %v433
    %v700 = vsub.f32 %v135, %v433
    %v701 = vmul.f32 %v617, %v533
    %v702 = vmul.f32 %v618, %v534
    %v703 = vmul.f32 %v619, %v535
    %v704 = vmul.f32 %v620, %v536
    %v705 = vmul.f32 %v621, %v537
    %v706 = vmul.f32 %v622, %v538
    %v707 = vmul.f32 %v623, %v539
    %v708 = vmul.f32 %v624, %v540
    %v709 = vmul.f32 %v625, %v541
    %v710 = vmul.f32 %v626, %v542
    %v711 = vmul.f32 %v627, %v543
    %v712 = vmul.f32 %v628, %v544
    %v713 = vmul.f32 %v629, %v545
    %v714 = vmul.f32 %v630, %v546
    %v715 = vmul.f32 %v631, %v547
    %v716 = vmul.f32 %v632, %v548
    %v717 = vmul.f32 %v633, %v549
    %v718 = vmul.f32 %v634, %v550
    %v719 = vmul.f32 %v635, %v551
    %v720 = vmul.f32 %v636, %v552
    %v721 = vmul.f32 %v637, %v553
    %v722 = vmul.f32 %v638, %v554
    %v723 = vmul.f32 %v639, %v555
    %v724 = vmul.f32 %v640, %v556
    %v725 = vmul.f32 %v641, %v557
    %v726 = vmul.f32 %v642, %v558
    %v727 = vmul.f32 %v643, %v559
    %v728 = vmul.f32 %v644, %v560
    %v729 = vmul.f32 %v645, %v561
    %v730 = vmul.f32 %v646, %v562
    %v731 = vmul.f32 %v647, %v563
    %v732 = vmul.f32 %v648, %v564
    %v733 = vmul.f32 %v649, %v565
    %v734 = vmul.f32 %v650, %v566
    %v735 = vmul.f32 %v651, %v567
    %v736 = vmul.f32 %v652, %v568
    %v737 = vmul.f32 %v653, %v569
    %v738 = vmul.f32 %v654, %v570
    %v739 = vmul.f32 %v655, %v571
    %v740 = vmul.f32 %v656, %v572
    %v741 = vmul.f32 %v657, %v573
    %v742 = vmul.f32 %v658, %v574
    %v743 = vmul.f32 %v659, %v575
    %v744 = vmul.f32 %v660, %v576
    %v745 = vmul.f32 %v661, %v577
    %v746 = vmul.f32 %v662, %v578
    %v747 = vmul.f32 %v663, %v579
    %v748 = vmul.f32 %v664, %v580
    %v749 = vmul.f32 %v665, %v581
    %v750 = vmul.f32 %v666, %v582
    %v751 = vmul.f32 %v667, %v583
    %v752 = vmul.f32 %v668, %v584
    %v753 = vmul.f32 %v669, %v585
    %v754 = vmul.f32 %v670, %v586
    %v755 = vmul.f32 %v671, %v587
    %v756 = vmul.f32 %v672, %v588
    %v757 = vmul.f32 %v673, %v589
    %v758 = vmul.f32 %v674, %v590
    %v759 = vmul.f32 %v675, %v591
    %v760 = vmul.f32 %v676, %v592
    %v761 = vmul.f32 %v677, %v593
    %v762 = vmul.f32 %v678, %v594
    %v763 = vmul.f32 %v679, %v595
    %v764 = vmul.f32 %v680, %v596
    %v765 = vmul.f32 %v681, %v597
    %v766 = vmul.f32 %v682, %v598
    %v767 = vmul.f32 %v683, %v599
    %v768 = vmul.f32 %v684, %v600
    %v769 = vmul.f32 %v685, %v601
    %v770 = vmul.f32 %v686, %v602
    %v771 = vmul.f32 %v687, %v603
    %v772 = vmul.f32 %v688, %v604
    %v773 = vmul.f32 %v689, %v605
    %v774 = vmul.f32 %v690, %v606
    %v775 = vmul.f32 %v691, %v607
    %v776 = vmul.f32 %v692, %v608
    %v777 = vmul.f32 %v693, %v609
    %v778 = vmul.f32 %v694, %v610
    %v779 = vmul.f32 %v695, %v611
    %v780 = vmul.f32 %v696, %v612
    %v781 = vmul.f32 %v697, %v613
    %v782 = vmul.f32 %v698, %v614
    %v783 = vmul.f32 %v699, %v615
    %v784 = vmul.f32 %v700, %v616
    %v785 = vld [vmem:[#allocation7] sm:$0xff]
    %v786 = vld [vmem:[#allocation7 + $0x8] sm:$0xf]
    %v789 = vlaneseq
    %v790 = vshrl.u32 %v789, 7
    %v791 = vsub.s32 0, %v790
    %v792 = vrot.slane %v785, %v791
    %v793 = vlaneseq
    %v794 = vshrl.u32 %v793, 7
    %v795 = vsub.s32 1, %v794
    %v796 = vrot.slane %v785, %v795
    %v797 = vlaneseq
    %v798 = vshrl.u32 %v797, 7
    %v799 = vsub.s32 2, %v798
    %v800 = vrot.slane %v785, %v799
    %v801 = vlaneseq
    %v802 = vshrl.u32 %v801, 7
    %v803 = vsub.s32 3, %v802
    %v804 = vrot.slane %v785, %v803
    %v805 = vlaneseq
    %v806 = vshrl.u32 %v805, 7
    %v807 = vsub.s32 4, %v806
    %v808 = vrot.slane %v785, %v807
    %v809 = vlaneseq
    %v810 = vshrl.u32 %v809, 7
    %v811 = vsub.s32 5, %v810
    %v812 = vrot.slane %v785, %v811
    %v813 = vlaneseq
    %v814 = vshrl.u32 %v813, 7
    %v815 = vsub.s32 6, %v814
    %v816 = vrot.slane %v785, %v815
    %v817 = vlaneseq
    %v818 = vshrl.u32 %v817, 7
    %v819 = vsub.s32 7, %v818
    %v820 = vrot.slane %v785, %v819
    %v821 = vlaneseq
    %v822 = vshrl.u32 %v821, 7
    %v823 = vsub.s32 0, %v822
    %v824 = vrot.slane %v786, %v823
    %v825 = vlaneseq
    %v826 = vshrl.u32 %v825, 7
    %v827 = vsub.s32 1, %v826
    %v828 = vrot.slane %v786, %v827
    %v829 = vlaneseq
    %v830 = vshrl.u32 %v829, 7
    %v831 = vsub.s32 2, %v830
    %v832 = vrot.slane %v786, %v831
    %v833 = vlaneseq
    %v834 = vshrl.u32 %v833, 7
    %v835 = vsub.s32 3, %v834
    %v836 = vrot.slane %v786, %v835
    %v849 = vadd.f32 %v701, %v792
    %v850 = vadd.f32 %v702, %v796
    %v851 = vadd.f32 %v703, %v800
    %v852 = vadd.f32 %v704, %v804
    %v853 = vadd.f32 %v705, %v808
    %v854 = vadd.f32 %v706, %v812
    %v855 = vadd.f32 %v707, %v816
    %v856 = vadd.f32 %v708, %v820
    %v857 = vadd.f32 %v709, %v824
    %v858 = vadd.f32 %v710, %v828
    %v859 = vadd.f32 %v711, %v832
    %v860 = vadd.f32 %v712, %v836
    %v861 = vadd.f32 %v713, %v792
    %v862 = vadd.f32 %v714, %v796
    %v863 = vadd.f32 %v715, %v800
    %v864 = vadd.f32 %v716, %v804
    %v865 = vadd.f32 %v717, %v808
    %v866 = vadd.f32 %v718, %v812
    %v867 = vadd.f32 %v719, %v816
    %v868 = vadd.f32 %v720, %v820
    %v869 = vadd.f32 %v721, %v824
    %v870 = vadd.f32 %v722, %v828
    %v871 = vadd.f32 %v723, %v832
    %v872 = vadd.f32 %v724, %v836
    %v873 = vadd.f32 %v725, %v792
    %v874 = vadd.f32 %v726, %v796
    %v875 = vadd.f32 %v727, %v800
    %v876 = vadd.f32 %v728, %v804
    %v877 = vadd.f32 %v729, %v808
    %v878 = vadd.f32 %v730, %v812
    %v879 = vadd.f32 %v731, %v816
    %v880 = vadd.f32 %v732, %v820
    %v881 = vadd.f32 %v733, %v824
    %v882 = vadd.f32 %v734, %v828
    %v883 = vadd.f32 %v735, %v832
    %v884 = vadd.f32 %v736, %v836
    %v885 = vadd.f32 %v737, %v792
    %v886 = vadd.f32 %v738, %v796
    %v887 = vadd.f32 %v739, %v800
    %v888 = vadd.f32 %v740, %v804
    %v889 = vadd.f32 %v741, %v808
    %v890 = vadd.f32 %v742, %v812
    %v891 = vadd.f32 %v743, %v816
    %v892 = vadd.f32 %v744, %v820
    %v893 = vadd.f32 %v745, %v824
    %v894 = vadd.f32 %v746, %v828
    %v895 = vadd.f32 %v747, %v832
    %v896 = vadd.f32 %v748, %v836
    %v897 = vadd.f32 %v749, %v792
    %v898 = vadd.f32 %v750, %v796
    %v899 = vadd.f32 %v751, %v800
    %v900 = vadd.f32 %v752, %v804
    %v901 = vadd.f32 %v753, %v808
    %v902 = vadd.f32 %v754, %v812
    %v903 = vadd.f32 %v755, %v816
    %v904 = vadd.f32 %v756, %v820
    %v905 = vadd.f32 %v757, %v824
    %v906 = vadd.f32 %v758, %v828
    %v907 = vadd.f32 %v759, %v832
    %v908 = vadd.f32 %v760, %v836
    %v909 = vadd.f32 %v761, %v792
    %v910 = vadd.f32 %v762, %v796
    %v911 = vadd.f32 %v763, %v800
    %v912 = vadd.f32 %v764, %v804
    %v913 = vadd.f32 %v765, %v808
    %v914 = vadd.f32 %v766, %v812
    %v915 = vadd.f32 %v767, %v816
    %v916 = vadd.f32 %v768, %v820
    %v917 = vadd.f32 %v769, %v824
    %v918 = vadd.f32 %v770, %v828
    %v919 = vadd.f32 %v771, %v832
    %v920 = vadd.f32 %v772, %v836
    %v921 = vadd.f32 %v773, %v792
    %v922 = vadd.f32 %v774, %v796
    %v923 = vadd.f32 %v775, %v800
    %v924 = vadd.f32 %v776, %v804
    %v925 = vadd.f32 %v777, %v808
    %v926 = vadd.f32 %v778, %v812
    %v927 = vadd.f32 %v779, %v816
    %v928 = vadd.f32 %v780, %v820
    %v929 = vadd.f32 %v781, %v824
    %v930 = vadd.f32 %v782, %v828
    %v931 = vadd.f32 %v783, %v832
    %v932 = vadd.f32 %v784, %v836
    %933 = vst [vmem:[#allocation8] sm:$0xff] %v849
    %934 = vst [vmem:[#allocation8 + $0x8] sm:$0xff] %v850
    %935 = vst [vmem:[#allocation8 + $0x10] sm:$0xff] %v851
    %936 = vst [vmem:[#allocation8 + $0x18] sm:$0xff] %v852
    %937 = vst [vmem:[#allocation8 + $0x20] sm:$0xff] %v853
    %938 = vst [vmem:[#allocation8 + $0x28] sm:$0xff] %v854
    %939 = vst [vmem:[#allocation8 + $0x30] sm:$0xff] %v855
    %940 = vst [vmem:[#allocation8 + $0x38] sm:$0xff] %v856
    %941 = vst [vmem:[#allocation8 + $0x40] sm:$0xff] %v857
    %942 = vst [vmem:[#allocation8 + $0x48] sm:$0xff] %v858
    %943 = vst [vmem:[#allocation8 + $0x50] sm:$0xff] %v859
    %944 = vst [vmem:[#allocation8 + $0x58] sm:$0xff] %v860
    %945 = vst [vmem:[#allocation8 + $0x60] sm:$0xff] %v861
    %946 = vst [vmem:[#allocation8 + $0x68] sm:$0xff] %v862
    %947 = vst [vmem:[#allocation8 + $0x70] sm:$0xff] %v863
    %948 = vst [vmem:[#allocation8 + $0x78] sm:$0xff] %v864
    %949 = vst [vmem:[#allocation8 + $0x80] sm:$0xff] %v865
    %950 = vst [vmem:[#allocation8 + $0x88] sm:$0xff] %v866
    %951 = vst [vmem:[#allocation8 + $0x90] sm:$0xff] %v867
    %952 = vst [vmem:[#allocation8 + $0x98] sm:$0xff] %v868
    %953 = vst [vmem:[#allocation8 + $0xa0] sm:$0xff] %v869
    %954 = vst [vmem:[#allocation8 + $0xa8] sm:$0xff] %v870
    %955 = vst [vmem:[#allocation8 + $0xb0] sm:$0xff] %v871
    %956 = vst [vmem:[#allocation8 + $0xb8] sm:$0xff] %v872
    %957 = vst [vmem:[#allocation8 + $0xc0] sm:$0xff] %v873
    %958 = vst [vmem:[#allocation8 + $0xc8] sm:$0xff] %v874
    %959 = vst [vmem:[#allocation8 + $0xd0] sm:$0xff] %v875
    %960 = vst [vmem:[#allocation8 + $0xd8] sm:$0xff] %v876
    %961 = vst [vmem:[#allocation8 + $0xe0] sm:$0xff] %v877
    %962 = vst [vmem:[#allocation8 + $0xe8] sm:$0xff] %v878
    %963 = vst [vmem:[#allocation8 + $0xf0] sm:$0xff] %v879
    %964 = vst [vmem:[#allocation8 + $0xf8] sm:$0xff] %v880
    %965 = vst [vmem:[#allocation8 + $0x100] sm:$0xff] %v881
    %966 = vst [vmem:[#allocation8 + $0x108] sm:$0xff] %v882
    %967 = vst [vmem:[#allocation8 + $0x110] sm:$0xff] %v883
    %968 = vst [vmem:[#allocation8 + $0x118] sm:$0xff] %v884
    %969 = vst [vmem:[#allocation8 + $0x120] sm:$0xff] %v885
    %970 = vst [vmem:[#allocation8 + $0x128] sm:$0xff] %v886
    %971 = vst [vmem:[#allocation8 + $0x130] sm:$0xff] %v887
    %972 = vst [vmem:[#allocation8 + $0x138] sm:$0xff] %v888
    %973 = vst [vmem:[#allocation8 + $0x140] sm:$0xff] %v889
    %974 = vst [vmem:[#allocation8 + $0x148] sm:$0xff] %v890
    %975 = vst [vmem:[#allocation8 + $0x150] sm:$0xff] %v891
    %976 = vst [vmem:[#allocation8 + $0x158] sm:$0xff] %v892
    %977 = vst [vmem:[#allocation8 + $0x160] sm:$0xff] %v893
    %978 = vst [vmem:[#allocation8 + $0x168] sm:$0xff] %v894
    %979 = vst [vmem:[#allocation8 + $0x170] sm:$0xff] %v895
    %980 = vst [vmem:[#allocation8 + $0x178] sm:$0xff] %v896
    %981 = vst [vmem:[#allocation8 + $0x180] sm:$0xff] %v897
    %982 = vst [vmem:[#allocation8 + $0x188] sm:$0xff] %v898
    %983 = vst [vmem:[#allocation8 + $0x190] sm:$0xff] %v899
    %984 = vst [vmem:[#allocation8 + $0x198] sm:$0xff] %v900
    %985 = vst [vmem:[#allocation8 + $0x1a0] sm:$0xff] %v901
    %986 = vst [vmem:[#allocation8 + $0x1a8] sm:$0xff] %v902
    %987 = vst [vmem:[#allocation8 + $0x1b0] sm:$0xff] %v903
    %988 = vst [vmem:[#allocation8 + $0x1b8] sm:$0xff] %v904
    %989 = vst [vmem:[#allocation8 + $0x1c0] sm:$0xff] %v905
    %990 = vst [vmem:[#allocation8 + $0x1c8] sm:$0xff] %v906
    %991 = vst [vmem:[#allocation8 + $0x1d0] sm:$0xff] %v907
    %992 = vst [vmem:[#allocation8 + $0x1d8] sm:$0xff] %v908
    %993 = vst [vmem:[#allocation8 + $0x1e0] sm:$0xff] %v909
    %994 = vst [vmem:[#allocation8 + $0x1e8] sm:$0xff] %v910
    %995 = vst [vmem:[#allocation8 + $0x1f0] sm:$0xff] %v911
    %996 = vst [vmem:[#allocation8 + $0x1f8] sm:$0xff] %v912
    %997 = vst [vmem:[#allocation8 + $0x200] sm:$0xff] %v913
    %998 = vst [vmem:[#allocation8 + $0x208] sm:$0xff] %v914
    %999 = vst [vmem:[#allocation8 + $0x210] sm:$0xff] %v915
    %1000 = vst [vmem:[#allocation8 + $0x218] sm:$0xff] %v916
    %1001 = vst [vmem:[#allocation8 + $0x220] sm:$0xff] %v917
    %1002 = vst [vmem:[#allocation8 + $0x228] sm:$0xff] %v918
    %1003 = vst [vmem:[#allocation8 + $0x230] sm:$0xff] %v919
    %1004 = vst [vmem:[#allocation8 + $0x238] sm:$0xff] %v920
    %1005 = vst [vmem:[#allocation8 + $0x240] sm:$0x1] %v921
    %1006 = vst [vmem:[#allocation8 + $0x248] sm:$0x1] %v922
    %1007 = vst [vmem:[#allocation8 + $0x250] sm:$0x1] %v923
    %1008 = vst [vmem:[#allocation8 + $0x258] sm:$0x1] %v924
    %1009 = vst [vmem:[#allocation8 + $0x260] sm:$0x1] %v925
    %1010 = vst [vmem:[#allocation8 + $0x268] sm:$0x1] %v926
    %1011 = vst [vmem:[#allocation8 + $0x270] sm:$0x1] %v927
    %1012 = vst [vmem:[#allocation8 + $0x278] sm:$0x1] %v928
    %1013 = vst [vmem:[#allocation8 + $0x280] sm:$0x1] %v929
    %1014 = vst [vmem:[#allocation8 + $0x288] sm:$0x1] %v930
    %1015 = vst [vmem:[#allocation8 + $0x290] sm:$0x1] %v931
    %1016 = vst [vmem:[#allocation8 + $0x298] sm:$0x1] %v932
    // Predicated region
    $region26: #{tpu_custom_call.1} parent=1 // pred_check
      _
    $region27: #{tpu_custom_call.1} parent=1 // pred_check_branch
      %1018 = sbr.rel (0) target = $region29
    $region28: #{tpu_custom_call.1} parent=1 // pred_region
      %s1020 = ssub.s32 10752, 10752
      %1021 = vsyncadd [#allocation4], %s1020
      %s1022 = sshll.u32 [#allocation8], 4
      %s1023 = int_to_ptr.vmem [resolvable:$true] %s1022
      %1028 = dma.vmem_to_hbm [thread:$0]  %s1023, 10752, %s3, [#allocation4], 1536, 1536, 96
    $region29: #{tpu_custom_call.1} parent=1 // pred_fallthru
      _
    // Predicated region
    $region30: #{tpu_custom_call.1} parent=1 // pred_check
      _
    $region31: #{tpu_custom_call.1} parent=1 // pred_check_branch
      %1030 = sbr.rel (0) target = $region33
    $region32: #{tpu_custom_call.1} parent=1 // pred_region
      %1031 = dma.done [#allocation4], 10752
    $region33: #{tpu_custom_call.1} parent=1 // pred_fallthru
      _
    %1032 = vsyncpa [#allocation3], 1
    %1033 = vsyncpa [#allocation6], 1
    %1034 = vsyncpa [#allocation4], 1

</llo_original>
